<compile_context>
chip_gen: v7x
topology: tpu7x:2x2x1
jax: 0.10.0
libtpu: 0.0.40
codegen_flags: <defaults>
</compile_context>

<pallas_src>
import functools

import jax
import jax.numpy as jnp
from jax.experimental import pallas as pl
from jax.experimental.pallas import tpu as pltpu

LANE = 128


def _round_up(x, m):
    return ((x + m - 1) // m) * m


# ----------------------------------------------------------------------------
# Fused Pallas kernel: runs the whole GCN stack in one invocation.
#   refs = (A_hat, X, W1, b1, W2, b2, ..., WL, bL, out)
# ----------------------------------------------------------------------------
def _fused_gnn_kernel(*refs, num_layers):
    a_ref, x_ref = refs[0], refs[1]
    o_ref = refs[-1]
    wb_refs = refs[2:-1]

    a = a_ref[...]          # [N, N]    resident in VMEM for all layers
    x = x_ref[...]          # [N, f_in]

    for li in range(num_layers):
        w = wb_refs[2 * li][...]        # [f_in_p, f_out_p]
        b = wb_refs[2 * li + 1][...]    # [1, f_out_p]
        # Aggregate-then-transform: (A @ X) @ W.  f_in <= f_out for every
        # layer of this stack, so the NxN matmul gets the smaller K dim.
        ax = jnp.dot(a, x, preferred_element_type=jnp.float32)     # [N, f_in_p]
        h = jnp.dot(ax, w, preferred_element_type=jnp.float32) + b  # [N, f_out_p]
        if li < num_layers - 1:
            h = jnp.maximum(h, 0.0)
            # TODO(synk): F.dropout(p=0.25) is identity in eval mode; training
            # mode stochastic dropout (pltpu.prng_*) intentionally omitted.
        x = h

    o_ref[...] = x.astype(o_ref.dtype)


def gnn_forward_fused(a_norm, features, params):
    """Full GNN forward (propagation='feature', eval mode), one pallas_call."""
    n = features.shape[0]
    num_layers = len(params)
    out_dim = params[-1][0].shape[1]

    # Zero-pad every layer's OUTPUT width up to a multiple of 128 so the
    # intermediate activations and the final HBM store are lane-dense.
    # Padded weight rows / bias entries are zero, so padded activation columns
    # stay exactly zero through bias + ReLU and contribute nothing downstream.
    padded = []
    prev_in = features.shape[1]           # first layer keeps its true input width
    for (w, b) in params:
        f_in, f_out = w.shape
        f_in_p = prev_in
        f_out_p = _round_up(f_out, LANE)
        w_p = jnp.zeros((f_in_p, f_out_p), jnp.float32).at[:f_in, :f_out].set(w)
        b_p = jnp.zeros((1, f_out_p), jnp.float32).at[:, :f_out].set(b)
        padded.append((w_p, b_p))
        prev_in = f_out_p
    out_p = padded[-1][0].shape[1]

    flat_params = []
    for (w_p, b_p) in padded:
        flat_params += [w_p, b_p]

    kernel = functools.partial(_fused_gnn_kernel, num_layers=num_layers)
    n_inputs = 2 + 2 * num_layers

    out_padded = pl.pallas_call(
        kernel,
        out_shape=jax.ShapeDtypeStruct((n, out_p), jnp.float32),
        # Single invocation (no grid): every operand is one full-array block
        # resident in VMEM for the whole fused stack.
        in_specs=[pl.BlockSpec(memory_space=pltpu.MemorySpace.VMEM)] * n_inputs,
        out_specs=pl.BlockSpec(memory_space=pltpu.MemorySpace.VMEM),
    )(a_norm, features, *flat_params)

    return out_padded[:, :out_dim]


# ----------------------------------------------------------------------------
# Plain-JAX glue: build D^{-1/2}(A+I)D^{-1/2} from edge_index, init params
# ----------------------------------------------------------------------------
def build_gcn_adjacency(edge_index, num_nodes):
    """Dense symmetric-normalized adjacency with self loops (PyG gcn_norm).

    Note: .at[].set dedups duplicate edges; matches the reference for simple
    graphs (like the demo ring) without repeated edges.
    """
    src = edge_index[0]
    dst = edge_index[1]
    a = jnp.zeros((num_nodes, num_nodes), jnp.float32)
    a = a.at[dst, src].set(1.0)          # message flows source -> target
    idx = jnp.arange(num_nodes)
    a = a.at[idx, idx].set(1.0)          # self loops
    deg = a.sum(axis=1)
    d_inv_sqrt = jnp.where(deg > 0, 1.0 / jnp.sqrt(deg), 0.0)
    return d_inv_sqrt[:, None] * a * d_inv_sqrt[None, :]


def glorot(key, shape):
    fan_in, fan_out = shape
    limit = jnp.sqrt(6.0 / (fan_in + fan_out))
    return jax.random.uniform(key, shape, jnp.float32, -limit, limit)


def init_gnn_params(key, in_dim=8, hid_dim=64, out_dim=112, num_layers=3):
    dims = [in_dim] + [hid_dim] * (num_layers - 1) + [out_dim]
    params = []
    for li in range(num_layers):
        key, wk = jax.random.split(key)
        w = glorot(wk, (dims[li], dims[li + 1]))
        b = jnp.zeros((dims[li + 1],), jnp.float32)   # PyG GCNConv bias init = zeros
        params.append((w, b))
    return params


def gnn_forward(features, edge_index, params):
    n = features.shape[0]
    a_norm = build_gcn_adjacency(edge_index, n)
    return gnn_forward_fused(a_norm, features, params)


# ----------------------------------------------------------------------------
# Demo
# ----------------------------------------------------------------------------
if __name__ == "__main__":
    key = jax.random.PRNGKey(0)
    k_feat, k_param = jax.random.split(key)

    N = 16          # number of graph nodes
    IN_DIM = 8
    HID_DIM = 64
    OUT_DIM = 112
    NUM_LAYERS = 3

    # deterministic node features
    features = jax.random.normal(k_feat, (N, IN_DIM), jnp.float32)

    # deterministic undirected ring graph: edges (i, i+1 mod N), both directions
    idx = jnp.arange(N)
    src = jnp.concatenate([idx, (idx + 1) % N])
    dst = jnp.concatenate([(idx + 1) % N, idx])
    edge_index = jnp.stack([src, dst], axis=0).astype(jnp.int32)   # [2, 2N]

    params = init_gnn_params(k_param, IN_DIM, HID_DIM, OUT_DIM, NUM_LAYERS)

    out = gnn_forward(features, edge_index, params)
    out = jax.block_until_ready(out)

    assert out.shape == (N, OUT_DIM), out.shape
    assert out.dtype == jnp.float32, out.dtype
    print("KERNEL_OK")
</pallas_src>

<mosaic_0001>
module attributes {stable_mosaic.version = 11 : i64} {
  func.func @_fused_gnn_kernel(%arg0: memref<16x16xf32, #tpu.memory_space<vmem>>, %arg1: memref<16x8xf32, #tpu.memory_space<vmem>>, %arg2: memref<8x128xf32, #tpu.memory_space<vmem>>, %arg3: memref<1x128xf32, #tpu.memory_space<vmem>>, %arg4: memref<128x128xf32, #tpu.memory_space<vmem>>, %arg5: memref<1x128xf32, #tpu.memory_space<vmem>>, %arg6: memref<128x128xf32, #tpu.memory_space<vmem>>, %arg7: memref<1x128xf32, #tpu.memory_space<vmem>>, %arg8: memref<16x128xf32, #tpu.memory_space<vmem>>) attributes {dimension_semantics = [], scalar_prefetch = 0 : i64, scratch_operands = 0 : i64, tpu.core_type = #tpu.core_type<tc>} {
    %c0 = arith.constant 0 : index
    %c0_0 = arith.constant 0 : index
    %0 = vector.load %arg0[%c0, %c0_0] : memref<16x16xf32, #tpu.memory_space<vmem>>, vector<16x16xf32>
    %c0_1 = arith.constant 0 : index
    %c0_2 = arith.constant 0 : index
    %1 = vector.load %arg1[%c0_1, %c0_2] : memref<16x8xf32, #tpu.memory_space<vmem>>, vector<16x8xf32>
    %c0_3 = arith.constant 0 : index
    %c0_4 = arith.constant 0 : index
    %2 = vector.load %arg2[%c0_3, %c0_4] : memref<8x128xf32, #tpu.memory_space<vmem>>, vector<8x128xf32>
    %c0_5 = arith.constant 0 : index
    %c0_6 = arith.constant 0 : index
    %3 = vector.load %arg3[%c0_5, %c0_6] : memref<1x128xf32, #tpu.memory_space<vmem>>, vector<1x128xf32>
    %cst = arith.constant dense<0.000000e+00> : vector<16x8xf32>
    %4 = tpu.matmul %0, %1, %cst {dimension_numbers = #tpu.dot_dimension_numbers<[1], [0], [0], [1], [0, 0, 1, 1], [], []>} : vector<16x16xf32>, vector<16x8xf32>, vector<16x8xf32> -> vector<16x8xf32>
    %cst_7 = arith.constant dense<0.000000e+00> : vector<16x128xf32>
    %5 = tpu.matmul %4, %2, %cst_7 {dimension_numbers = #tpu.dot_dimension_numbers<[1], [0], [0], [1], [0, 0, 1, 1], [], []>} : vector<16x8xf32>, vector<8x128xf32>, vector<16x128xf32> -> vector<16x128xf32>
    %6 = vector.broadcast %3 : vector<1x128xf32> to vector<16x128xf32>
    %7 = arith.addf %5, %6 : vector<16x128xf32>
    %cst_8 = arith.constant 0.000000e+00 : f32
    %8 = vector.broadcast %cst_8 : f32 to vector<16x128xf32>
    %9 = arith.maximumf %7, %8 : vector<16x128xf32>
    %c0_9 = arith.constant 0 : index
    %c0_10 = arith.constant 0 : index
    %10 = vector.load %arg4[%c0_9, %c0_10] : memref<128x128xf32, #tpu.memory_space<vmem>>, vector<128x128xf32>
    %c0_11 = arith.constant 0 : index
    %c0_12 = arith.constant 0 : index
    %11 = vector.load %arg5[%c0_11, %c0_12] : memref<1x128xf32, #tpu.memory_space<vmem>>, vector<1x128xf32>
    %cst_13 = arith.constant dense<0.000000e+00> : vector<16x128xf32>
    %12 = tpu.matmul %0, %9, %cst_13 {dimension_numbers = #tpu.dot_dimension_numbers<[1], [0], [0], [1], [0, 0, 1, 1], [], []>} : vector<16x16xf32>, vector<16x128xf32>, vector<16x128xf32> -> vector<16x128xf32>
    %cst_14 = arith.constant dense<0.000000e+00> : vector<16x128xf32>
    %13 = tpu.matmul %12, %10, %cst_14 {dimension_numbers = #tpu.dot_dimension_numbers<[1], [0], [0], [1], [0, 0, 1, 1], [], []>} : vector<16x128xf32>, vector<128x128xf32>, vector<16x128xf32> -> vector<16x128xf32>
    %14 = vector.broadcast %11 : vector<1x128xf32> to vector<16x128xf32>
    %15 = arith.addf %13, %14 : vector<16x128xf32>
    %cst_15 = arith.constant 0.000000e+00 : f32
    %16 = vector.broadcast %cst_15 : f32 to vector<16x128xf32>
    %17 = arith.maximumf %15, %16 : vector<16x128xf32>
    %c0_16 = arith.constant 0 : index
    %c0_17 = arith.constant 0 : index
    %18 = vector.load %arg6[%c0_16, %c0_17] : memref<128x128xf32, #tpu.memory_space<vmem>>, vector<128x128xf32>
    %c0_18 = arith.constant 0 : index
    %c0_19 = arith.constant 0 : index
    %19 = vector.load %arg7[%c0_18, %c0_19] : memref<1x128xf32, #tpu.memory_space<vmem>>, vector<1x128xf32>
    %cst_20 = arith.constant dense<0.000000e+00> : vector<16x128xf32>
    %20 = tpu.matmul %0, %17, %cst_20 {dimension_numbers = #tpu.dot_dimension_numbers<[1], [0], [0], [1], [0, 0, 1, 1], [], []>} : vector<16x16xf32>, vector<16x128xf32>, vector<16x128xf32> -> vector<16x128xf32>
    %cst_21 = arith.constant dense<0.000000e+00> : vector<16x128xf32>
    %21 = tpu.matmul %20, %18, %cst_21 {dimension_numbers = #tpu.dot_dimension_numbers<[1], [0], [0], [1], [0, 0, 1, 1], [], []>} : vector<16x128xf32>, vector<128x128xf32>, vector<16x128xf32> -> vector<16x128xf32>
    %22 = vector.broadcast %19 : vector<1x128xf32> to vector<16x128xf32>
    %23 = arith.addf %21, %22 : vector<16x128xf32>
    %c0_22 = arith.constant 0 : index
    %c0_23 = arith.constant 0 : index
    %24 = vector.load %arg8[%c0_22, %c0_23] : memref<16x128xf32, #tpu.memory_space<vmem>>, vector<16x128xf32>
    tpu.vector_store %arg8[%c0_22, %c0_23], %23 {strides = array<i32>} : memref<16x128xf32, #tpu.memory_space<vmem>>, vector<16x128xf32>,
    return
  }
}

</mosaic_0001>

<llo_original>
// kernel: tpu_custom_call.1
$region0: #{tpu_custom_call.1}
  #allocation0 [shape = 'u32[]', space=smem, size = 0x4, offset = 0x4, fixed_abs, tag = 'smem constant byte address 0x4 - core index']
  #allocation1 [shape = 'u32[144,128]{1,0:T(1,128)}', space=vmem, size = 0x12000, scoped, tag = 'internal scratch']
  %s0 = inlined_call_operand.vmem [shape: f32[16,16], index: 0, kind: input, shape index: {}]
  %s1 = inlined_call_operand.vmem [shape: f32[16,8], index: 1, kind: input, shape index: {}]
  %s2 = inlined_call_operand.vmem [shape: f32[8,128], index: 2, kind: input, shape index: {}]
  %s3 = inlined_call_operand.vmem [shape: f32[1,128], index: 3, kind: input, shape index: {}]
  %s4 = inlined_call_operand.hbm [shape: f32[128,128], index: 4, kind: input, shape index: {}]
  %s5 = inlined_call_operand.vmem [shape: f32[1,128], index: 5, kind: input, shape index: {}]
  %s6 = inlined_call_operand.hbm [shape: f32[128,128], index: 6, kind: input, shape index: {}]
  %s7 = inlined_call_operand.vmem [shape: f32[1,128], index: 7, kind: input, shape index: {}]
  %s8 = inlined_call_operand.hbm [shape: f32[16,128], index: 8, kind: output, shape index: {}]
  %s9 = sld [smem:[#allocation0]]
  $region50: #{tpu_custom_call.1} parent=0
    _
  %s11 = ssub.s32 1, %s9
  %s12 = scalar_select 0, %s11, %s9
  $region1: #{tpu_custom_call.1} parent=0
    #allocation2 [shape = 'u8[65536]{0}', space=vmem, size = 0x10000, scoped, tag = 'input window, operand 4, single buffered']
    #allocation3 [shape = 's32[1]{0}', space=sflag, size = 0x4, scoped, tag = 'scoped memory for tpu_custom_call.1']
    #allocation4 [shape = 's32[1]{0}', space=sflag, size = 0x4, scoped, tag = 'scoped memory for tpu_custom_call.1']
    #allocation5 [shape = 'u8[65536]{0}', space=vmem, size = 0x10000, scoped, tag = 'input window, operand 6, single buffered']
    #allocation6 [shape = 's32[1]{0}', space=sflag, size = 0x4, scoped, tag = 'scoped memory for tpu_custom_call.1']
    #allocation7 [shape = 'u8[8192]{0}', space=vmem, size = 0x2000, scoped, tag = 'output window, operand 0, single buffered']
    %13 = vsyncpa [#allocation3], 0
    %14 = vsyncpa [#allocation6], 0
    %15 = vsyncpa [#allocation4], 0
    // Predicated region
    $region2: #{tpu_custom_call.1} parent=1 // pred_check
      _
    $region3: #{tpu_custom_call.1} parent=1 // pred_check_branch
      %17 = sbr.rel (0) target = $region5
    $region4: #{tpu_custom_call.1} parent=1 // pred_region
      _
    $region5: #{tpu_custom_call.1} parent=1 // pred_fallthru
      _
    // Predicated region
    $region6: #{tpu_custom_call.1} parent=1 // pred_check
      _
    $region7: #{tpu_custom_call.1} parent=1 // pred_check_branch
      %19 = sbr.rel (0) target = $region9
    $region8: #{tpu_custom_call.1} parent=1 // pred_region
      _
    $region9: #{tpu_custom_call.1} parent=1 // pred_fallthru
      _
    // Predicated region
    $region10: #{tpu_custom_call.1} parent=1 // pred_check
      _
    $region11: #{tpu_custom_call.1} parent=1 // pred_check_branch
      %21 = sbr.rel (0) target = $region13
    $region12: #{tpu_custom_call.1} parent=1 // pred_region
      _
    $region13: #{tpu_custom_call.1} parent=1 // pred_fallthru
      _
    // Predicated region
    $region14: #{tpu_custom_call.1} parent=1 // pred_check
      _
    $region15: #{tpu_custom_call.1} parent=1 // pred_check_branch
      %23 = sbr.rel (0) target = $region17
    $region16: #{tpu_custom_call.1} parent=1 // pred_region
      _
    $region17: #{tpu_custom_call.1} parent=1 // pred_fallthru
      _
    // Predicated region
    $region18: #{tpu_custom_call.1} parent=1 // pred_check
      _
    $region19: #{tpu_custom_call.1} parent=1 // pred_check_branch
      %25 = sbr.rel (0) target = $region21
    $region20: #{tpu_custom_call.1} parent=1 // pred_region
      %s27 = ssub.s32 2048, 2048
      %28 = vsyncadd [#allocation3], %s27
      %s29 = sshll.u32 [#allocation2], 4
      %s30 = int_to_ptr.vmem [resolvable:$true] %s29
      %35 = dma.hbm_to_vmem [thread:$0]  %s4, 2048, %s30, [#allocation3], 128, 128, 8
    $region21: #{tpu_custom_call.1} parent=1 // pred_fallthru
      _
    // Predicated region
    $region22: #{tpu_custom_call.1} parent=1 // pred_check
      _
    $region23: #{tpu_custom_call.1} parent=1 // pred_check_branch
      %37 = sbr.rel (0) target = $region25
    $region24: #{tpu_custom_call.1} parent=1 // pred_region
      _
    $region25: #{tpu_custom_call.1} parent=1 // pred_fallthru
      _
    // Predicated region
    $region26: #{tpu_custom_call.1} parent=1 // pred_check
      _
    $region27: #{tpu_custom_call.1} parent=1 // pred_check_branch
      %39 = sbr.rel (0) target = $region29
    $region28: #{tpu_custom_call.1} parent=1 // pred_region
      %s41 = ssub.s32 2048, 2048
      %42 = vsyncadd [#allocation6], %s41
      %s43 = sshll.u32 [#allocation5], 4
      %s44 = int_to_ptr.vmem [resolvable:$true] %s43
      %49 = dma.hbm_to_vmem [thread:$0]  %s6, 2048, %s44, [#allocation6], 128, 128, 8
    $region29: #{tpu_custom_call.1} parent=1 // pred_fallthru
      _
    // Predicated region
    $region30: #{tpu_custom_call.1} parent=1 // pred_check
      _
    $region31: #{tpu_custom_call.1} parent=1 // pred_check_branch
      %51 = sbr.rel (0) target = $region33
    $region32: #{tpu_custom_call.1} parent=1 // pred_region
      _
    $region33: #{tpu_custom_call.1} parent=1 // pred_fallthru
      _
    // Predicated region
    $region34: #{tpu_custom_call.1} parent=1 // pred_check
      _
    $region35: #{tpu_custom_call.1} parent=1 // pred_check_branch
      %53 = sbr.rel (0) target = $region37
    $region36: #{tpu_custom_call.1} parent=1 // pred_region
      %54 = dma.done [#allocation3], 2048
    $region37: #{tpu_custom_call.1} parent=1 // pred_fallthru
      _
    // Predicated region
    $region38: #{tpu_custom_call.1} parent=1 // pred_check
      _
    $region39: #{tpu_custom_call.1} parent=1 // pred_check_branch
      %56 = sbr.rel (0) target = $region41
    $region40: #{tpu_custom_call.1} parent=1 // pred_region
      %57 = dma.done [#allocation6], 2048
    $region41: #{tpu_custom_call.1} parent=1 // pred_fallthru
      _
    %v58 = vld [vmem:[%s0] sm:$0xff]
    %v59 = vld [vmem:[%s0 + $0x8] sm:$0xff]
    %v60 = vld [vmem:[%s1] sm:$0xff]
    %v61 = vld [vmem:[%s1 + $0x8] sm:$0xff]
    %v62 = vld [vmem:[%s2] sm:$0xff]
    %v63 = vld [vmem:[%s3] sm:$0x1]
    %vm64 = vcmask 130048
    %v66 = vsel %vm64, %v58, 0
    %v69 = vsel %vm64, %v59, 0
    %71 = vmatprep.subr.mxu0 0.0
    %72 = vmatpush1.msra.mxu0 %v60
    %73 = vmatprep.subr.mxu0 0.0
    %74 = vmatpush1.msra.mxu0 %v61
    %75 = vmatprep.subr.mxu0 0.0
    %76 = vmatpush1.msra.mxu0 0.0
    %77 = vmatprep.subr.mxu0 0.0
    %78 = vmatpush1.msra.mxu0 0.0
    %79 = vmatprep.subr.mxu0 0.0
    %80 = vmatpush1.msra.mxu0 0.0
    %81 = vmatprep.subr.mxu0 0.0
    %82 = vmatpush1.msra.mxu0 0.0
    %83 = vmatprep.subr.mxu0 0.0
    %84 = vmatpush1.msra.mxu0 0.0
    %85 = vmatprep.subr.mxu0 0.0
    %86 = vmatpush1.msra.mxu0 0.0
    %87 = vmatprep.subr.mxu0 0.0
    %88 = vmatpush1.msra.mxu0 0.0
    %89 = vmatprep.subr.mxu0 0.0
    %90 = vmatpush1.msra.mxu0 0.0
    %91 = vmatprep.subr.mxu0 0.0
    %92 = vmatpush1.msra.mxu0 0.0
    %93 = vmatprep.subr.mxu0 0.0
    %94 = vmatpush1.msra.mxu0 0.0
    %95 = vmatprep.subr.mxu0 0.0
    %96 = vmatpush1.msra.mxu0 0.0
    %97 = vmatprep.subr.mxu0 0.0
    %98 = vmatpush1.msra.mxu0 0.0
    %99 = vmatprep.subr.mxu0 0.0
    %100 = vmatpush1.msra.mxu0 0.0
    %101 = vmatprep.subr.mxu0 0.0
    %102 = vmatpush1.msra.mxu0 0.0
    %103 = vmatprep.subr.mxu0 0.0
    %104 = vmatpush1.msra.mxu0 0.0
    %105 = vmatprep.subr.mxu0 0.0
    %106 = vmatpush1.msra.mxu0 0.0
    %107 = vmatprep.subr.mxu0 0.0
    %108 = vmatpush1.msra.mxu0 0.0
    %109 = vmatprep.subr.mxu0 0.0
    %110 = vmatpush1.msra.mxu0 0.0
    %111 = vmatprep.subr.mxu0 0.0
    %112 = vmatpush1.msra.mxu0 0.0
    %113 = vmatprep.subr.mxu0 0.0
    %114 = vmatpush1.msra.mxu0 0.0
    %115 = vmatprep.subr.mxu0 0.0
    %116 = vmatpush1.msra.mxu0 0.0
    %117 = vmatprep.subr.mxu0 0.0
    %118 = vmatpush1.msra.mxu0 0.0
    %119 = vmatprep.subr.mxu0 0.0
    %120 = vmatpush1.msra.mxu0 0.0
    %121 = vmatprep.subr.mxu0 0.0
    %122 = vmatpush1.msra.mxu0 0.0
    %123 = vmatprep.subr.mxu0 0.0
    %124 = vmatpush1.msra.mxu0 0.0
    %125 = vmatprep.subr.mxu0 0.0
    %126 = vmatpush1.msra.mxu0 0.0
    %127 = vmatprep.subr.mxu0 0.0
    %128 = vmatpush1.msra.mxu0 0.0
    %129 = vmatprep.subr.mxu0 0.0
    %130 = vmatpush1.msra.mxu0 0.0
    %131 = vmatprep.subr.mxu0 0.0
    %132 = vmatpush1.msra.mxu0 0.0
    %133 = vmatprep.subr.mxu0 0.0
    %134 = vmatpush1.msra.mxu0 0.0
    %135 = vmatprep.mubr.f32.mxu0 0.0
    %136 = vmatmul.mubr.f32.gmra.mrb[0].mxu0 %v66
    %v137 = vpop.f32.mrb[0].mxu0
    %v138 = vadd.f32 0.0, %v137
    %v139 = vpop.f32.mrb[0].mxu0
    %140 = vmatprep.mubr.f32.mxu0 0.0
    %141 = vmatmul.mubr.f32.gmra.mrb[0].mxu0 %v69
    %v142 = vpop.f32.mrb[0].mxu0
    %v143 = vadd.f32 0.0, %v142
    %v144 = vpop.f32.mrb[0].mxu0
    %145 = vdwg.mxu0
    %v147 = vlaneseq
    %v148 = vshrl.u32 %v147, 7
    %v149 = vsub.s32 0, %v148
    %v150 = vrot.slane %v63, %v149
    %vm152 = vcmask 64512
    %v154 = vsel %vm152, %v138, 0
    %v157 = vsel %vm152, %v143, 0
    %159 = vmatprep.subr.mxu0 0.0
    %160 = vmatpush1.msra.mxu0 %v62
    %161 = vmatprep.subr.mxu0 0.0
    %162 = vmatpush1.msra.mxu0 0.0
    %163 = vmatprep.subr.mxu0 0.0
    %164 = vmatpush1.msra.mxu0 0.0
    %165 = vmatprep.subr.mxu0 0.0
    %166 = vmatpush1.msra.mxu0 0.0
    %167 = vmatprep.subr.mxu0 0.0
    %168 = vmatpush1.msra.mxu0 0.0
    %169 = vmatprep.subr.mxu0 0.0
    %170 = vmatpush1.msra.mxu0 0.0
    %171 = vmatprep.subr.mxu0 0.0
    %172 = vmatpush1.msra.mxu0 0.0
    %173 = vmatprep.subr.mxu0 0.0
    %174 = vmatpush1.msra.mxu0 0.0
    %175 = vmatprep.subr.mxu0 0.0
    %176 = vmatpush1.msra.mxu0 0.0
    %177 = vmatprep.subr.mxu0 0.0
    %178 = vmatpush1.msra.mxu0 0.0
    %179 = vmatprep.subr.mxu0 0.0
    %180 = vmatpush1.msra.mxu0 0.0
    %181 = vmatprep.subr.mxu0 0.0
    %182 = vmatpush1.msra.mxu0 0.0
    %183 = vmatprep.subr.mxu0 0.0
    %184 = vmatpush1.msra.mxu0 0.0
    %185 = vmatprep.subr.mxu0 0.0
    %186 = vmatpush1.msra.mxu0 0.0
    %187 = vmatprep.subr.mxu0 0.0
    %188 = vmatpush1.msra.mxu0 0.0
    %189 = vmatprep.subr.mxu0 0.0
    %190 = vmatpush1.msra.mxu0 0.0
    %191 = vmatprep.subr.mxu0 0.0
    %192 = vmatpush1.msra.mxu0 0.0
    %193 = vmatprep.subr.mxu0 0.0
    %194 = vmatpush1.msra.mxu0 0.0
    %195 = vmatprep.subr.mxu0 0.0
    %196 = vmatpush1.msra.mxu0 0.0
    %197 = vmatprep.subr.mxu0 0.0
    %198 = vmatpush1.msra.mxu0 0.0
    %199 = vmatprep.subr.mxu0 0.0
    %200 = vmatpush1.msra.mxu0 0.0
    %201 = vmatprep.subr.mxu0 0.0
    %202 = vmatpush1.msra.mxu0 0.0
    %203 = vmatprep.subr.mxu0 0.0
    %204 = vmatpush1.msra.mxu0 0.0
    %205 = vmatprep.subr.mxu0 0.0
    %206 = vmatpush1.msra.mxu0 0.0
    %207 = vmatprep.subr.mxu0 0.0
    %208 = vmatpush1.msra.mxu0 0.0
    %209 = vmatprep.subr.mxu0 0.0
    %210 = vmatpush1.msra.mxu0 0.0
    %211 = vmatprep.subr.mxu0 0.0
    %212 = vmatpush1.msra.mxu0 0.0
    %213 = vmatprep.subr.mxu0 0.0
    %214 = vmatpush1.msra.mxu0 0.0
    %215 = vmatprep.subr.mxu0 0.0
    %216 = vmatpush1.msra.mxu0 0.0
    %217 = vmatprep.subr.mxu0 0.0
    %218 = vmatpush1.msra.mxu0 0.0
    %219 = vmatprep.subr.mxu0 0.0
    %220 = vmatpush1.msra.mxu0 0.0
    %221 = vmatprep.subr.mxu0 0.0
    %222 = vmatpush1.msra.mxu0 0.0
    %223 = vmatprep.mubr.f32.mxu0 0.0
    %224 = vmatmul.mubr.f32.gmra.mrb[0].mxu0 %v154
    %v225 = vpop.f32.mrb[0].mxu0
    %v226 = vadd.f32 %v150, %v225
    %v227 = vpop.f32.mrb[0].mxu0
    %228 = vmatprep.mubr.f32.mxu0 0.0
    %229 = vmatmul.mubr.f32.gmra.mrb[0].mxu0 %v157
    %v230 = vpop.f32.mrb[0].mxu0
    %v231 = vadd.f32 %v150, %v230
    %v232 = vpop.f32.mrb[0].mxu0
    %233 = vdwg.mxu0
    %v234 = vmax.f32 %v226, 0.0
    %v235 = vmax.f32 %v231, 0.0
    %v236 = vld [vmem:[#allocation2] sm:$0xff]
    %v237 = vld [vmem:[#allocation2 + $0x8] sm:$0xff]
    %v238 = vld [vmem:[#allocation2 + $0x10] sm:$0xff]
    %v239 = vld [vmem:[#allocation2 + $0x18] sm:$0xff]
    %v240 = vld [vmem:[#allocation2 + $0x20] sm:$0xff]
    %v241 = vld [vmem:[#allocation2 + $0x28] sm:$0xff]
    %v242 = vld [vmem:[#allocation2 + $0x30] sm:$0xff]
    %v243 = vld [vmem:[#allocation2 + $0x38] sm:$0xff]
    %v244 = vld [vmem:[#allocation2 + $0x40] sm:$0xff]
    %v245 = vld [vmem:[#allocation2 + $0x48] sm:$0xff]
    %v246 = vld [vmem:[#allocation2 + $0x50] sm:$0xff]
    %v247 = vld [vmem:[#allocation2 + $0x58] sm:$0xff]
    %v248 = vld [vmem:[#allocation2 + $0x60] sm:$0xff]
    %v249 = vld [vmem:[#allocation2 + $0x68] sm:$0xff]
    %v250 = vld [vmem:[#allocation2 + $0x70] sm:$0xff]
    %v251 = vld [vmem:[#allocation2 + $0x78] sm:$0xff]
    %v252 = vld [vmem:[%s5] sm:$0x1]
    %253 = vmatprep.subr.mxu0 0.0
    %254 = vmatpush1.msra.mxu0 %v234
    %255 = vmatprep.subr.mxu0 0.0
    %256 = vmatpush1.msra.mxu0 %v235
    %257 = vmatprep.subr.mxu0 0.0
    %258 = vmatpush1.msra.mxu0 0.0
    %259 = vmatprep.subr.mxu0 0.0
    %260 = vmatpush1.msra.mxu0 0.0
    %261 = vmatprep.subr.mxu0 0.0
    %262 = vmatpush1.msra.mxu0 0.0
    %263 = vmatprep.subr.mxu0 0.0
    %264 = vmatpush1.msra.mxu0 0.0
    %265 = vmatprep.subr.mxu0 0.0
    %266 = vmatpush1.msra.mxu0 0.0
    %267 = vmatprep.subr.mxu0 0.0
    %268 = vmatpush1.msra.mxu0 0.0
    %269 = vmatprep.subr.mxu0 0.0
    %270 = vmatpush1.msra.mxu0 0.0
    %271 = vmatprep.subr.mxu0 0.0
    %272 = vmatpush1.msra.mxu0 0.0
    %273 = vmatprep.subr.mxu0 0.0
    %274 = vmatpush1.msra.mxu0 0.0
    %275 = vmatprep.subr.mxu0 0.0
    %276 = vmatpush1.msra.mxu0 0.0
    %277 = vmatprep.subr.mxu0 0.0
    %278 = vmatpush1.msra.mxu0 0.0
    %279 = vmatprep.subr.mxu0 0.0
    %280 = vmatpush1.msra.mxu0 0.0
    %281 = vmatprep.subr.mxu0 0.0
    %282 = vmatpush1.msra.mxu0 0.0
    %283 = vmatprep.subr.mxu0 0.0
    %284 = vmatpush1.msra.mxu0 0.0
    %285 = vmatprep.subr.mxu0 0.0
    %286 = vmatpush1.msra.mxu0 0.0
    %287 = vmatprep.subr.mxu0 0.0
    %288 = vmatpush1.msra.mxu0 0.0
    %289 = vmatprep.subr.mxu0 0.0
    %290 = vmatpush1.msra.mxu0 0.0
    %291 = vmatprep.subr.mxu0 0.0
    %292 = vmatpush1.msra.mxu0 0.0
    %293 = vmatprep.subr.mxu0 0.0
    %294 = vmatpush1.msra.mxu0 0.0
    %295 = vmatprep.subr.mxu0 0.0
    %296 = vmatpush1.msra.mxu0 0.0
    %297 = vmatprep.subr.mxu0 0.0
    %298 = vmatpush1.msra.mxu0 0.0
    %299 = vmatprep.subr.mxu0 0.0
    %300 = vmatpush1.msra.mxu0 0.0
    %301 = vmatprep.subr.mxu0 0.0
    %302 = vmatpush1.msra.mxu0 0.0
    %303 = vmatprep.subr.mxu0 0.0
    %304 = vmatpush1.msra.mxu0 0.0
    %305 = vmatprep.subr.mxu0 0.0
    %306 = vmatpush1.msra.mxu0 0.0
    %307 = vmatprep.subr.mxu0 0.0
    %308 = vmatpush1.msra.mxu0 0.0
    %309 = vmatprep.subr.mxu0 0.0
    %310 = vmatpush1.msra.mxu0 0.0
    %311 = vmatprep.subr.mxu0 0.0
    %312 = vmatpush1.msra.mxu0 0.0
    %313 = vmatprep.subr.mxu0 0.0
    %314 = vmatpush1.msra.mxu0 0.0
    %315 = vmatprep.subr.mxu0 0.0
    %316 = vmatpush1.msra.mxu0 0.0
    %317 = vmatprep.mubr.f32.mxu0 0.0
    %318 = vmatmul.mubr.f32.gmra.mrb[0].mxu0 %v66
    %v319 = vpop.f32.mrb[0].mxu0
    %v320 = vadd.f32 0.0, %v319
    %v321 = vpop.f32.mrb[0].mxu0
    %322 = vmatprep.mubr.f32.mxu0 0.0
    %323 = vmatmul.mubr.f32.gmra.mrb[0].mxu0 %v69
    %v324 = vpop.f32.mrb[0].mxu0
    %v325 = vadd.f32 0.0, %v324
    %v326 = vpop.f32.mrb[0].mxu0
    %327 = vdwg.mxu0
    %v329 = vlaneseq
    %v330 = vshrl.u32 %v329, 7
    %v331 = vsub.s32 0, %v330
    %v332 = vrot.slane %v252, %v331
    %334 = vmatprep.subr.mxu0 0.0
    %335 = vmatpush1.msra.mxu0 %v236
    %336 = vmatprep.subr.mxu0 0.0
    %337 = vmatpush1.msra.mxu0 %v237
    %338 = vmatprep.subr.mxu0 0.0
    %339 = vmatpush1.msra.mxu0 %v238
    %340 = vmatprep.subr.mxu0 0.0
    %341 = vmatpush1.msra.mxu0 %v239
    %342 = vmatprep.subr.mxu0 0.0
    %343 = vmatpush1.msra.mxu0 %v240
    %344 = vmatprep.subr.mxu0 0.0
    %345 = vmatpush1.msra.mxu0 %v241
    %346 = vmatprep.subr.mxu0 0.0
    %347 = vmatpush1.msra.mxu0 %v242
    %348 = vmatprep.subr.mxu0 0.0
    %349 = vmatpush1.msra.mxu0 %v243
    %350 = vmatprep.subr.mxu0 0.0
    %351 = vmatpush1.msra.mxu0 %v244
    %352 = vmatprep.subr.mxu0 0.0
    %353 = vmatpush1.msra.mxu0 %v245
    %354 = vmatprep.subr.mxu0 0.0
    %355 = vmatpush1.msra.mxu0 %v246
    %356 = vmatprep.subr.mxu0 0.0
    %357 = vmatpush1.msra.mxu0 %v247
    %358 = vmatprep.subr.mxu0 0.0
    %359 = vmatpush1.msra.mxu0 %v248
    %360 = vmatprep.subr.mxu0 0.0
    %361 = vmatpush1.msra.mxu0 %v249
    %362 = vmatprep.subr.mxu0 0.0
    %363 = vmatpush1.msra.mxu0 %v250
    %364 = vmatprep.subr.mxu0 0.0
    %365 = vmatpush1.msra.mxu0 %v251
    %366 = vmatprep.subr.mxu0 0.0
    %367 = vmatpush1.msra.mxu0 0.0
    %368 = vmatprep.subr.mxu0 0.0
    %369 = vmatpush1.msra.mxu0 0.0
    %370 = vmatprep.subr.mxu0 0.0
    %371 = vmatpush1.msra.mxu0 0.0
    %372 = vmatprep.subr.mxu0 0.0
    %373 = vmatpush1.msra.mxu0 0.0
    %374 = vmatprep.subr.mxu0 0.0
    %375 = vmatpush1.msra.mxu0 0.0
    %376 = vmatprep.subr.mxu0 0.0
    %377 = vmatpush1.msra.mxu0 0.0
    %378 = vmatprep.subr.mxu0 0.0
    %379 = vmatpush1.msra.mxu0 0.0
    %380 = vmatprep.subr.mxu0 0.0
    %381 = vmatpush1.msra.mxu0 0.0
    %382 = vmatprep.subr.mxu0 0.0
    %383 = vmatpush1.msra.mxu0 0.0
    %384 = vmatprep.subr.mxu0 0.0
    %385 = vmatpush1.msra.mxu0 0.0
    %386 = vmatprep.subr.mxu0 0.0
    %387 = vmatpush1.msra.mxu0 0.0
    %388 = vmatprep.subr.mxu0 0.0
    %389 = vmatpush1.msra.mxu0 0.0
    %390 = vmatprep.subr.mxu0 0.0
    %391 = vmatpush1.msra.mxu0 0.0
    %392 = vmatprep.subr.mxu0 0.0
    %393 = vmatpush1.msra.mxu0 0.0
    %394 = vmatprep.subr.mxu0 0.0
    %395 = vmatpush1.msra.mxu0 0.0
    %396 = vmatprep.subr.mxu0 0.0
    %397 = vmatpush1.msra.mxu0 0.0
    %398 = vmatprep.mubr.f32.mxu0 0.0
    %399 = vmatmul.mubr.f32.gmra.mrb[0].mxu0 %v320
    %v400 = vpop.f32.mrb[0].mxu0
    %v401 = vadd.f32 %v332, %v400
    %v402 = vpop.f32.mrb[0].mxu0
    %403 = vmatprep.mubr.f32.mxu0 0.0
    %404 = vmatmul.mubr.f32.gmra.mrb[0].mxu0 %v325
    %v405 = vpop.f32.mrb[0].mxu0
    %v406 = vadd.f32 %v332, %v405
    %v407 = vpop.f32.mrb[0].mxu0
    %408 = vdwg.mxu0
    %v409 = vmax.f32 %v401, 0.0
    %v410 = vmax.f32 %v406, 0.0
    %v411 = vld [vmem:[#allocation5] sm:$0xff]
    %v412 = vld [vmem:[#allocation5 + $0x8] sm:$0xff]
    %v413 = vld [vmem:[#allocation5 + $0x10] sm:$0xff]
    %v414 = vld [vmem:[#allocation5 + $0x18] sm:$0xff]
    %v415 = vld [vmem:[#allocation5 + $0x20] sm:$0xff]
    %v416 = vld [vmem:[#allocation5 + $0x28] sm:$0xff]
    %v417 = vld [vmem:[#allocation5 + $0x30] sm:$0xff]
    %v418 = vld [vmem:[#allocation5 + $0x38] sm:$0xff]
    %v419 = vld [vmem:[#allocation5 + $0x40] sm:$0xff]
    %v420 = vld [vmem:[#allocation5 + $0x48] sm:$0xff]
    %v421 = vld [vmem:[#allocation5 + $0x50] sm:$0xff]
    %v422 = vld [vmem:[#allocation5 + $0x58] sm:$0xff]
    %v423 = vld [vmem:[#allocation5 + $0x60] sm:$0xff]
    %v424 = vld [vmem:[#allocation5 + $0x68] sm:$0xff]
    %v425 = vld [vmem:[#allocation5 + $0x70] sm:$0xff]
    %v426 = vld [vmem:[#allocation5 + $0x78] sm:$0xff]
    %v427 = vld [vmem:[%s7] sm:$0x1]
    %428 = vmatprep.subr.mxu0 0.0
    %429 = vmatpush1.msra.mxu0 %v409
    %430 = vmatprep.subr.mxu0 0.0
    %431 = vmatpush1.msra.mxu0 %v410
    %432 = vmatprep.subr.mxu0 0.0
    %433 = vmatpush1.msra.mxu0 0.0
    %434 = vmatprep.subr.mxu0 0.0
    %435 = vmatpush1.msra.mxu0 0.0
    %436 = vmatprep.subr.mxu0 0.0
    %437 = vmatpush1.msra.mxu0 0.0
    %438 = vmatprep.subr.mxu0 0.0
    %439 = vmatpush1.msra.mxu0 0.0
    %440 = vmatprep.subr.mxu0 0.0
    %441 = vmatpush1.msra.mxu0 0.0
    %442 = vmatprep.subr.mxu0 0.0
    %443 = vmatpush1.msra.mxu0 0.0
    %444 = vmatprep.subr.mxu0 0.0
    %445 = vmatpush1.msra.mxu0 0.0
    %446 = vmatprep.subr.mxu0 0.0
    %447 = vmatpush1.msra.mxu0 0.0
    %448 = vmatprep.subr.mxu0 0.0
    %449 = vmatpush1.msra.mxu0 0.0
    %450 = vmatprep.subr.mxu0 0.0
    %451 = vmatpush1.msra.mxu0 0.0
    %452 = vmatprep.subr.mxu0 0.0
    %453 = vmatpush1.msra.mxu0 0.0
    %454 = vmatprep.subr.mxu0 0.0
    %455 = vmatpush1.msra.mxu0 0.0
    %456 = vmatprep.subr.mxu0 0.0
    %457 = vmatpush1.msra.mxu0 0.0
    %458 = vmatprep.subr.mxu0 0.0
    %459 = vmatpush1.msra.mxu0 0.0
    %460 = vmatprep.subr.mxu0 0.0
    %461 = vmatpush1.msra.mxu0 0.0
    %462 = vmatprep.subr.mxu0 0.0
    %463 = vmatpush1.msra.mxu0 0.0
    %464 = vmatprep.subr.mxu0 0.0
    %465 = vmatpush1.msra.mxu0 0.0
    %466 = vmatprep.subr.mxu0 0.0
    %467 = vmatpush1.msra.mxu0 0.0
    %468 = vmatprep.subr.mxu0 0.0
    %469 = vmatpush1.msra.mxu0 0.0
    %470 = vmatprep.subr.mxu0 0.0
    %471 = vmatpush1.msra.mxu0 0.0
    %472 = vmatprep.subr.mxu0 0.0
    %473 = vmatpush1.msra.mxu0 0.0
    %474 = vmatprep.subr.mxu0 0.0
    %475 = vmatpush1.msra.mxu0 0.0
    %476 = vmatprep.subr.mxu0 0.0
    %477 = vmatpush1.msra.mxu0 0.0
    %478 = vmatprep.subr.mxu0 0.0
    %479 = vmatpush1.msra.mxu0 0.0
    %480 = vmatprep.subr.mxu0 0.0
    %481 = vmatpush1.msra.mxu0 0.0
    %482 = vmatprep.subr.mxu0 0.0
    %483 = vmatpush1.msra.mxu0 0.0
    %484 = vmatprep.subr.mxu0 0.0
    %485 = vmatpush1.msra.mxu0 0.0
    %486 = vmatprep.subr.mxu0 0.0
    %487 = vmatpush1.msra.mxu0 0.0
    %488 = vmatprep.subr.mxu0 0.0
    %489 = vmatpush1.msra.mxu0 0.0
    %490 = vmatprep.subr.mxu0 0.0
    %491 = vmatpush1.msra.mxu0 0.0
    %492 = vmatprep.mubr.f32.mxu0 0.0
    %493 = vmatmul.mubr.f32.gmra.mrb[0].mxu0 %v66
    %v494 = vpop.f32.mrb[0].mxu0
    %v495 = vadd.f32 0.0, %v494
    %v496 = vpop.f32.mrb[0].mxu0
    %497 = vmatprep.mubr.f32.mxu0 0.0
    %498 = vmatmul.mubr.f32.gmra.mrb[0].mxu0 %v69
    %v499 = vpop.f32.mrb[0].mxu0
    %v500 = vadd.f32 0.0, %v499
    %v501 = vpop.f32.mrb[0].mxu0
    %502 = vdwg.mxu0
    %v504 = vlaneseq
    %v505 = vshrl.u32 %v504, 7
    %v506 = vsub.s32 0, %v505
    %v507 = vrot.slane %v427, %v506
    %509 = vmatprep.subr.mxu0 0.0
    %510 = vmatpush1.msra.mxu0 %v411
    %511 = vmatprep.subr.mxu0 0.0
    %512 = vmatpush1.msra.mxu0 %v412
    %513 = vmatprep.subr.mxu0 0.0
    %514 = vmatpush1.msra.mxu0 %v413
    %515 = vmatprep.subr.mxu0 0.0
    %516 = vmatpush1.msra.mxu0 %v414
    %517 = vmatprep.subr.mxu0 0.0
    %518 = vmatpush1.msra.mxu0 %v415
    %519 = vmatprep.subr.mxu0 0.0
    %520 = vmatpush1.msra.mxu0 %v416
    %521 = vmatprep.subr.mxu0 0.0
    %522 = vmatpush1.msra.mxu0 %v417
    %523 = vmatprep.subr.mxu0 0.0
    %524 = vmatpush1.msra.mxu0 %v418
    %525 = vmatprep.subr.mxu0 0.0
    %526 = vmatpush1.msra.mxu0 %v419
    %527 = vmatprep.subr.mxu0 0.0
    %528 = vmatpush1.msra.mxu0 %v420
    %529 = vmatprep.subr.mxu0 0.0
    %530 = vmatpush1.msra.mxu0 %v421
    %531 = vmatprep.subr.mxu0 0.0
    %532 = vmatpush1.msra.mxu0 %v422
    %533 = vmatprep.subr.mxu0 0.0
    %534 = vmatpush1.msra.mxu0 %v423
    %535 = vmatprep.subr.mxu0 0.0
    %536 = vmatpush1.msra.mxu0 %v424
    %537 = vmatprep.subr.mxu0 0.0
    %538 = vmatpush1.msra.mxu0 %v425
    %539 = vmatprep.subr.mxu0 0.0
    %540 = vmatpush1.msra.mxu0 %v426
    %541 = vmatprep.subr.mxu0 0.0
    %542 = vmatpush1.msra.mxu0 0.0
    %543 = vmatprep.subr.mxu0 0.0
    %544 = vmatpush1.msra.mxu0 0.0
    %545 = vmatprep.subr.mxu0 0.0
    %546 = vmatpush1.msra.mxu0 0.0
    %547 = vmatprep.subr.mxu0 0.0
    %548 = vmatpush1.msra.mxu0 0.0
    %549 = vmatprep.subr.mxu0 0.0
    %550 = vmatpush1.msra.mxu0 0.0
    %551 = vmatprep.subr.mxu0 0.0
    %552 = vmatpush1.msra.mxu0 0.0
    %553 = vmatprep.subr.mxu0 0.0
    %554 = vmatpush1.msra.mxu0 0.0
    %555 = vmatprep.subr.mxu0 0.0
    %556 = vmatpush1.msra.mxu0 0.0
    %557 = vmatprep.subr.mxu0 0.0
    %558 = vmatpush1.msra.mxu0 0.0
    %559 = vmatprep.subr.mxu0 0.0
    %560 = vmatpush1.msra.mxu0 0.0
    %561 = vmatprep.subr.mxu0 0.0
    %562 = vmatpush1.msra.mxu0 0.0
    %563 = vmatprep.subr.mxu0 0.0
    %564 = vmatpush1.msra.mxu0 0.0
    %565 = vmatprep.subr.mxu0 0.0
    %566 = vmatpush1.msra.mxu0 0.0
    %567 = vmatprep.subr.mxu0 0.0
    %568 = vmatpush1.msra.mxu0 0.0
    %569 = vmatprep.subr.mxu0 0.0
    %570 = vmatpush1.msra.mxu0 0.0
    %571 = vmatprep.subr.mxu0 0.0
    %572 = vmatpush1.msra.mxu0 0.0
    %573 = vmatprep.mubr.f32.mxu0 0.0
    %574 = vmatmul.mubr.f32.gmra.mrb[0].mxu0 %v495
    %v575 = vpop.f32.mrb[0].mxu0
    %v576 = vadd.f32 %v507, %v575
    %v577 = vpop.f32.mrb[0].mxu0
    %578 = vmatprep.mubr.f32.mxu0 0.0
    %579 = vmatmul.mubr.f32.gmra.mrb[0].mxu0 %v500
    %v580 = vpop.f32.mrb[0].mxu0
    %v581 = vadd.f32 %v507, %v580
    %v582 = vpop.f32.mrb[0].mxu0
    %583 = vdwg.mxu0
    %584 = vst [vmem:[#allocation7] sm:$0xff] %v576
    %585 = vst [vmem:[#allocation7 + $0x8] sm:$0xff] %v581
    // Predicated region
    $region42: #{tpu_custom_call.1} parent=1 // pred_check
      _
    $region43: #{tpu_custom_call.1} parent=1 // pred_check_branch
      %587 = sbr.rel (0) target = $region45
    $region44: #{tpu_custom_call.1} parent=1 // pred_region
      %s589 = ssub.s32 256, 256
      %590 = vsyncadd [#allocation4], %s589
      %s591 = sshll.u32 [#allocation7], 4
      %s592 = int_to_ptr.vmem [resolvable:$true] %s591
      %597 = dma.vmem_to_hbm [thread:$0]  %s592, 256, %s8, [#allocation4], 128, 128, 8
    $region45: #{tpu_custom_call.1} parent=1 // pred_fallthru
      _
    // Predicated region
    $region46: #{tpu_custom_call.1} parent=1 // pred_check
      _
    $region47: #{tpu_custom_call.1} parent=1 // pred_check_branch
      %599 = sbr.rel (0) target = $region49
    $region48: #{tpu_custom_call.1} parent=1 // pred_region
      %600 = dma.done [#allocation4], 256
    $region49: #{tpu_custom_call.1} parent=1 // pred_fallthru
      _
    %601 = vsyncpa [#allocation3], 1
    %602 = vsyncpa [#allocation6], 1
    %603 = vsyncpa [#allocation4], 1

</llo_original>
